<compile_context>
chip_gen: v7x
topology: tpu7x:2x2x1
jax: 0.10.0
libtpu: 0.0.40
codegen_flags: <defaults>
</compile_context>

<pallas_src>
import math

import jax
import jax.numpy as jnp
from jax.experimental import pallas as pl
from jax.experimental.pallas import tpu as pltpu


def alpha_kernel(x_ref, y_ref, w1x_ref, w1y_ref, b1_ref,
                 gamma_ref, beta_ref, w2d_ref, b2d_ref, out_ref):
    """Fused forward pass for one TM-row tile."""
    # Linear(2*dim -> dim): cat(x, y) @ W1^T == x @ W1x + y @ W1y  (implicit concat).
    h = (jnp.dot(x_ref[...], w1x_ref[...], preferred_element_type=jnp.float32)
         + jnp.dot(y_ref[...], w1y_ref[...], preferred_element_type=jnp.float32)
         + b1_ref[...])

    # LayerNorm over the feature (lane) axis, f32 statistics, eps = 1e-5 (nn.LayerNorm default).
    mean = jnp.mean(h, axis=-1, keepdims=True)
    var = jnp.mean(jnp.square(h - mean), axis=-1, keepdims=True)
    hn = (h - mean) * jax.lax.rsqrt(var + 1e-5)
    hn = hn * gamma_ref[...] + beta_ref[...]

    # Softplus, numerically stable: log(1 + exp(x)) = logaddexp(x, 0).
    sp = jnp.logaddexp(hn, 0.0)

    # 2-class softmax == sigmoid of the logit difference:
    #   softmax(sp @ W2^T + b2)[..., 1] = sigmoid(sp @ (w2_1 - w2_0) + (b2_1 - b2_0))
    d = jnp.sum(sp * w2d_ref[...], axis=-1, keepdims=True) + b2d_ref[...]
    p1 = 1.0 / (1.0 + jnp.exp(-d))

    out_ref[:, 0:1] = 1.0 - p1
    out_ref[:, 1:2] = p1


def _round_up(x, m):
    return (x + m - 1) // m * m


def alpha_forward(x, y, params, tile_rows=512):
    """x, y: [batch, seq, dim]; params = raw module parameters. Returns [batch, seq, 2]."""
    w1, b1, gamma, beta, w2, b2 = params
    b, s, dim = x.shape
    n = b * s
    x2 = x.reshape(n, dim)
    y2 = y.reshape(n, dim)

    # One-time parameter re-layout for the kernel.
    w1x = jnp.transpose(w1[:, :dim])                         # (dim, dim), acts on x
    w1y = jnp.transpose(w1[:, dim:])                         # (dim, dim), acts on y
    b1r = b1.reshape(1, dim).astype(jnp.float32)
    gammar = gamma.reshape(1, dim).astype(jnp.float32)
    betar = beta.reshape(1, dim).astype(jnp.float32)
    w2d = (w2[1, :] - w2[0, :]).reshape(1, dim).astype(jnp.float32)
    b2d = (b2[1] - b2[0]).reshape(1, 1).astype(jnp.float32)

    # Row tiling: TM up to `tile_rows` rows (multiple of 8 for the sublane constraint);
    # pad N so every grid step sees a full block (padded rows are finite and discarded).
    # At dim=256/f32 a block is ~0.5 MiB, so double-buffered inputs + resident weights
    # stay far below the scoped VMEM limits on v5e/v6e/v7x.
    tm = min(int(tile_rows), _round_up(n, 8))
    n_pad = _round_up(n, tm)
    if n_pad != n:
        pad = n_pad - n
        x2 = jnp.pad(x2, ((0, pad), (0, 0)))
        y2 = jnp.pad(y2, ((0, pad), (0, 0)))

    grid = (n_pad // tm,)

    cost = pl.CostEstimate(
        flops=int(4 * n_pad * dim * dim + 8 * n_pad * dim),
        transcendentals=int(2 * n_pad * dim + n_pad),
        bytes_accessed=int(n_pad * (2 * dim * x.dtype.itemsize + 2 * 4)
                           + 2 * dim * dim * 4 + 4 * dim * 4),
    )

    out = pl.pallas_call(
        alpha_kernel,
        out_shape=jax.ShapeDtypeStruct((n_pad, 2), jnp.float32),
        grid=grid,
        in_specs=[
            pl.BlockSpec((tm, dim), lambda i: (i, 0)),     # x tile (pipelined)
            pl.BlockSpec((tm, dim), lambda i: (i, 0)),     # y tile (pipelined)
            pl.BlockSpec((dim, dim), lambda i: (0, 0)),    # W1x (resident)
            pl.BlockSpec((dim, dim), lambda i: (0, 0)),    # W1y (resident)
            pl.BlockSpec((1, dim), lambda i: (0, 0)),      # b1
            pl.BlockSpec((1, dim), lambda i: (0, 0)),      # LayerNorm gamma
            pl.BlockSpec((1, dim), lambda i: (0, 0)),      # LayerNorm beta
            pl.BlockSpec((1, dim), lambda i: (0, 0)),      # w2[1] - w2[0]
            pl.BlockSpec((1, 1), lambda i: (0, 0)),        # b2[1] - b2[0]
        ],
        out_specs=pl.BlockSpec((tm, 2), lambda i: (i, 0)),
        compiler_params=pltpu.CompilerParams(
            dimension_semantics=("parallel",)),
        cost_estimate=cost,
    )(x2, y2, w1x, w1y, b1r, gammar, betar, w2d, b2d)

    return out[:n].reshape(b, s, 2)


def alpha_reference(x, y, params):
    """Pure-JAX reference that mirrors the PyTorch module exactly."""
    w1, b1, gamma, beta, w2, b2 = params
    cat = jnp.concatenate([x, y], axis=-1)
    h = jnp.dot(cat, w1.T, precision=jax.lax.Precision.HIGHEST) + b1
    mean = jnp.mean(h, axis=-1, keepdims=True)
    var = jnp.mean(jnp.square(h - mean), axis=-1, keepdims=True)
    hn = (h - mean) * jax.lax.rsqrt(var + 1e-5) * gamma + beta
    sp = jnp.logaddexp(hn, 0.0)
    logits = jnp.dot(sp, w2.T, precision=jax.lax.Precision.HIGHEST) + b2
    return jax.nn.softmax(logits, axis=-1)


def make_params(dim, p_x=0.2, seed=0):
    """Deterministic synthetic parameters with the PyTorch module's shapes/init."""
    key = jax.random.PRNGKey(seed)
    k1, k2, k3 = jax.random.split(key, 3)

    # nn.Linear(2*dim, dim): weight (dim, 2*dim), bias (dim,)
    bound1 = 1.0 / math.sqrt(2 * dim)
    w1 = jax.random.uniform(k1, (dim, 2 * dim), jnp.float32, -bound1, bound1)
    b1 = jax.random.uniform(k2, (dim,), jnp.float32, -bound1, bound1)

    # nn.LayerNorm(dim)
    gamma = jnp.ones((dim,), jnp.float32)
    beta = jnp.zeros((dim,), jnp.float32)

    # nn.Linear(dim, 2): weight (2, dim); bias overwritten to [-z, z]
    bound2 = 1.0 / math.sqrt(dim)
    w2 = jax.random.uniform(k3, (2, dim), jnp.float32, -bound2, bound2)
    z = math.log((1.0 - p_x) / p_x) * 0.5
    b2 = jnp.array([-z, z], jnp.float32)

    return (w1, b1, gamma, beta, w2, b2)


if __name__ == "__main__":
    dim = 32
    batch, seq = 2, 8

    key = jax.random.PRNGKey(0)
    kx, ky = jax.random.split(key)
    x = jax.random.normal(kx, (batch, seq, dim), jnp.float32)
    y = jax.random.normal(ky, (batch, seq, dim), jnp.float32)

    params = make_params(dim, p_x=0.2, seed=0)

    out = alpha_forward(x, y, params)
    jax.block_until_ready(out)

    ref = alpha_reference(x, y, params)

    assert out.shape == (batch, seq, 2)
    # rows of the softmax output must sum to 1
    assert bool(jnp.allclose(jnp.sum(out, axis=-1), 1.0, atol=1e-5))
    # kernel must match the exact (softmax-form) reference
    assert bool(jnp.allclose(out, ref, atol=1e-3, rtol=1e-3))

    print("KERNEL_OK")
</pallas_src>

<mosaic_0001>
module attributes {stable_mosaic.version = 11 : i64} {
  func.func @alpha_kernel(%arg0: i32, %arg1: memref<16x32xf32, #tpu.memory_space<vmem>>, %arg2: memref<16x32xf32, #tpu.memory_space<vmem>>, %arg3: memref<32x32xf32, #tpu.memory_space<vmem>>, %arg4: memref<32x32xf32, #tpu.memory_space<vmem>>, %arg5: memref<1x32xf32, #tpu.memory_space<vmem>>, %arg6: memref<1x32xf32, #tpu.memory_space<vmem>>, %arg7: memref<1x32xf32, #tpu.memory_space<vmem>>, %arg8: memref<1x32xf32, #tpu.memory_space<vmem>>, %arg9: memref<1x1xf32, #tpu.memory_space<vmem>>, %arg10: memref<16x2xf32, #tpu.memory_space<vmem>>) attributes {dimension_semantics = [#tpu.dimension_semantics<parallel>], iteration_bounds = array<i64: 1>, scalar_prefetch = 0 : i64, scratch_operands = 0 : i64, tpu.core_type = #tpu.core_type<tc>, window_params = [{transform_indices = @transform_0, window_bounds = array<i64: 16, 32>}, {transform_indices = @transform_1, window_bounds = array<i64: 16, 32>}, {pipeline_mode = #tpu.pipeline_mode<synchronous>, transform_indices = @transform_2, window_bounds = array<i64: 32, 32>}, {pipeline_mode = #tpu.pipeline_mode<synchronous>, transform_indices = @transform_3, window_bounds = array<i64: 32, 32>}, {pipeline_mode = #tpu.pipeline_mode<synchronous>, transform_indices = @transform_4, window_bounds = array<i64: 1, 32>}, {pipeline_mode = #tpu.pipeline_mode<synchronous>, transform_indices = @transform_5, window_bounds = array<i64: 1, 32>}, {pipeline_mode = #tpu.pipeline_mode<synchronous>, transform_indices = @transform_6, window_bounds = array<i64: 1, 32>}, {pipeline_mode = #tpu.pipeline_mode<synchronous>, transform_indices = @transform_7, window_bounds = array<i64: 1, 32>}, {pipeline_mode = #tpu.pipeline_mode<synchronous>, transform_indices = @transform_8, window_bounds = array<i64: 1, 1>}, {transform_indices = @transform_9, window_bounds = array<i64: 16, 2>}]} {
    %c0 = arith.constant 0 : index
    %c0_0 = arith.constant 0 : index
    %0 = vector.load %arg1[%c0, %c0_0] : memref<16x32xf32, #tpu.memory_space<vmem>>, vector<16x32xf32>
    %c0_1 = arith.constant 0 : index
    %c0_2 = arith.constant 0 : index
    %1 = vector.load %arg3[%c0_1, %c0_2] : memref<32x32xf32, #tpu.memory_space<vmem>>, vector<32x32xf32>
    %cst = arith.constant dense<0.000000e+00> : vector<16x32xf32>
    %2 = tpu.matmul %0, %1, %cst {dimension_numbers = #tpu.dot_dimension_numbers<[1], [0], [0], [1], [0, 0, 1, 1], [], []>} : vector<16x32xf32>, vector<32x32xf32>, vector<16x32xf32> -> vector<16x32xf32>
    %c0_3 = arith.constant 0 : index
    %c0_4 = arith.constant 0 : index
    %3 = vector.load %arg2[%c0_3, %c0_4] : memref<16x32xf32, #tpu.memory_space<vmem>>, vector<16x32xf32>
    %c0_5 = arith.constant 0 : index
    %c0_6 = arith.constant 0 : index
    %4 = vector.load %arg4[%c0_5, %c0_6] : memref<32x32xf32, #tpu.memory_space<vmem>>, vector<32x32xf32>
    %cst_7 = arith.constant dense<0.000000e+00> : vector<16x32xf32>
    %5 = tpu.matmul %3, %4, %cst_7 {dimension_numbers = #tpu.dot_dimension_numbers<[1], [0], [0], [1], [0, 0, 1, 1], [], []>} : vector<16x32xf32>, vector<32x32xf32>, vector<16x32xf32> -> vector<16x32xf32>
    %6 = arith.addf %2, %5 : vector<16x32xf32>
    %c0_8 = arith.constant 0 : index
    %c0_9 = arith.constant 0 : index
    %7 = vector.load %arg5[%c0_8, %c0_9] : memref<1x32xf32, #tpu.memory_space<vmem>>, vector<1x32xf32>
    %8 = vector.broadcast %7 : vector<1x32xf32> to vector<16x32xf32>
    %9 = arith.addf %6, %8 : vector<16x32xf32>
    %cst_10 = arith.constant dense<0.000000e+00> : vector<16xf32>
    %10 = vector.multi_reduction <add>, %9, %cst_10 [1] : vector<16x32xf32> to vector<16xf32>
    %11 = vector.shape_cast %10 : vector<16xf32> to vector<16x1xf32>
    %cst_11 = arith.constant 3.200000e+01 : f32
    %12 = vector.broadcast %cst_11 : f32 to vector<16x1xf32>
    %13 = arith.divf %11, %12 : vector<16x1xf32>
    %14 = vector.broadcast %13 : vector<16x1xf32> to vector<16x32xf32>
    %15 = arith.subf %9, %14 : vector<16x32xf32>
    %16 = arith.mulf %15, %15 : vector<16x32xf32>
    %cst_12 = arith.constant dense<0.000000e+00> : vector<16xf32>
    %17 = vector.multi_reduction <add>, %16, %cst_12 [1] : vector<16x32xf32> to vector<16xf32>
    %18 = vector.shape_cast %17 : vector<16xf32> to vector<16x1xf32>
    %cst_13 = arith.constant 3.200000e+01 : f32
    %19 = vector.broadcast %cst_13 : f32 to vector<16x1xf32>
    %20 = arith.divf %18, %19 : vector<16x1xf32>
    %21 = vector.broadcast %13 : vector<16x1xf32> to vector<16x32xf32>
    %22 = arith.subf %9, %21 : vector<16x32xf32>
    %cst_14 = arith.constant 9.99999974E-6 : f32
    %23 = vector.broadcast %cst_14 : f32 to vector<16x1xf32>
    %24 = arith.addf %20, %23 : vector<16x1xf32>
    %25 = math.rsqrt %24 : vector<16x1xf32>
    %26 = vector.broadcast %25 : vector<16x1xf32> to vector<16x32xf32>
    %27 = arith.mulf %22, %26 : vector<16x32xf32>
    %c0_15 = arith.constant 0 : index
    %c0_16 = arith.constant 0 : index
    %28 = vector.load %arg6[%c0_15, %c0_16] : memref<1x32xf32, #tpu.memory_space<vmem>>, vector<1x32xf32>
    %29 = vector.broadcast %28 : vector<1x32xf32> to vector<16x32xf32>
    %30 = arith.mulf %27, %29 : vector<16x32xf32>
    %c0_17 = arith.constant 0 : index
    %c0_18 = arith.constant 0 : index
    %31 = vector.load %arg7[%c0_17, %c0_18] : memref<1x32xf32, #tpu.memory_space<vmem>>, vector<1x32xf32>
    %32 = vector.broadcast %31 : vector<1x32xf32> to vector<16x32xf32>
    %33 = arith.addf %30, %32 : vector<16x32xf32>
    %cst_19 = arith.constant 0.000000e+00 : f32
    %34 = vector.broadcast %cst_19 : f32 to vector<16x32xf32>
    %35 = arith.maximumf %33, %34 : vector<16x32xf32>
    %36 = vector.broadcast %cst_19 : f32 to vector<16x32xf32>
    %37 = arith.subf %33, %36 : vector<16x32xf32>
    %38 = arith.cmpf one, %37, %37 : vector<16x32xf32>
    %39 = vector.broadcast %cst_19 : f32 to vector<16x32xf32>
    %40 = arith.addf %33, %39 : vector<16x32xf32>
    %41 = math.absf %37 : vector<16x32xf32>
    %cst_20 = arith.constant 0.000000e+00 : f32
    %42 = vector.broadcast %cst_20 : f32 to vector<16x32xf32>
    %43 = arith.subf %42, %41 : vector<16x32xf32>
    %44 = math.exp %43 : vector<16x32xf32>
    %45 = math.log1p %44 : vector<16x32xf32>
    %46 = arith.addf %35, %45 : vector<16x32xf32>
    %47 = arith.select %38, %40, %46 : vector<16x32xi1>, vector<16x32xf32>
    %c0_21 = arith.constant 0 : index
    %c0_22 = arith.constant 0 : index
    %48 = vector.load %arg8[%c0_21, %c0_22] : memref<1x32xf32, #tpu.memory_space<vmem>>, vector<1x32xf32>
    %49 = vector.broadcast %48 : vector<1x32xf32> to vector<16x32xf32>
    %50 = arith.mulf %47, %49 : vector<16x32xf32>
    %cst_23 = arith.constant dense<0.000000e+00> : vector<16xf32>
    %51 = vector.multi_reduction <add>, %50, %cst_23 [1] : vector<16x32xf32> to vector<16xf32>
    %52 = vector.shape_cast %51 : vector<16xf32> to vector<16x1xf32>
    %c0_24 = arith.constant 0 : index
    %c0_25 = arith.constant 0 : index
    %53 = vector.load %arg9[%c0_24, %c0_25] : memref<1x1xf32, #tpu.memory_space<vmem>>, vector<1x1xf32>
    %54 = vector.broadcast %53 : vector<1x1xf32> to vector<16x1xf32>
    %55 = arith.addf %52, %54 : vector<16x1xf32>
    %cst_26 = arith.constant 0.000000e+00 : f32
    %56 = vector.broadcast %cst_26 : f32 to vector<16x1xf32>
    %57 = arith.subf %56, %55 : vector<16x1xf32>
    %58 = math.exp %57 : vector<16x1xf32>
    %cst_27 = arith.constant 1.000000e+00 : f32
    %59 = vector.broadcast %cst_27 : f32 to vector<16x1xf32>
    %60 = arith.addf %59, %58 : vector<16x1xf32>
    %cst_28 = arith.constant 1.000000e+00 : f32
    %61 = vector.broadcast %cst_28 : f32 to vector<16x1xf32>
    %62 = arith.divf %61, %60 : vector<16x1xf32>
    %cst_29 = arith.constant 1.000000e+00 : f32
    %63 = vector.broadcast %cst_29 : f32 to vector<16x1xf32>
    %64 = arith.subf %63, %62 : vector<16x1xf32>
    %c0_30 = arith.constant 0 : index
    %c0_31 = arith.constant 0 : index
    %65 = vector.load %arg10[%c0_30, %c0_31] : memref<16x2xf32, #tpu.memory_space<vmem>>, vector<16x1xf32>
    tpu.vector_store %arg10[%c0_30, %c0_31], %64 {strides = array<i32>} : memref<16x2xf32, #tpu.memory_space<vmem>>, vector<16x1xf32>,
    %c0_32 = arith.constant 0 : index
    %c1 = arith.constant 1 : index
    %66 = vector.load %arg10[%c0_32, %c1] : memref<16x2xf32, #tpu.memory_space<vmem>>, vector<16x1xf32>
    tpu.vector_store %arg10[%c0_32, %c1], %62 {strides = array<i32>} : memref<16x2xf32, #tpu.memory_space<vmem>>, vector<16x1xf32>,
    return
  }
  func.func @transform_0(%arg0: i32) -> (i32, i32) {
    %c0_i32 = arith.constant 0 : i32
    %c0_i32_0 = arith.constant 0 : i32
    return %arg0, %c0_i32 : i32, i32
  }
  func.func @transform_1(%arg0: i32) -> (i32, i32) {
    %c0_i32 = arith.constant 0 : i32
    %c0_i32_0 = arith.constant 0 : i32
    return %arg0, %c0_i32 : i32, i32
  }
  func.func @transform_2(%arg0: i32) -> (i32, i32) {
    %c0_i32 = arith.constant 0 : i32
    %c0_i32_0 = arith.constant 0 : i32
    %c0_i32_1 = arith.constant 0 : i32
    return %c0_i32, %c0_i32_0 : i32, i32
  }
  func.func @transform_3(%arg0: i32) -> (i32, i32) {
    %c0_i32 = arith.constant 0 : i32
    %c0_i32_0 = arith.constant 0 : i32
    %c0_i32_1 = arith.constant 0 : i32
    return %c0_i32, %c0_i32_0 : i32, i32
  }
  func.func @transform_4(%arg0: i32) -> (i32, i32) {
    %c0_i32 = arith.constant 0 : i32
    %c0_i32_0 = arith.constant 0 : i32
    %c0_i32_1 = arith.constant 0 : i32
    return %c0_i32, %c0_i32_0 : i32, i32
  }
  func.func @transform_5(%arg0: i32) -> (i32, i32) {
    %c0_i32 = arith.constant 0 : i32
    %c0_i32_0 = arith.constant 0 : i32
    %c0_i32_1 = arith.constant 0 : i32
    return %c0_i32, %c0_i32_0 : i32, i32
  }
  func.func @transform_6(%arg0: i32) -> (i32, i32) {
    %c0_i32 = arith.constant 0 : i32
    %c0_i32_0 = arith.constant 0 : i32
    %c0_i32_1 = arith.constant 0 : i32
    return %c0_i32, %c0_i32_0 : i32, i32
  }
  func.func @transform_7(%arg0: i32) -> (i32, i32) {
    %c0_i32 = arith.constant 0 : i32
    %c0_i32_0 = arith.constant 0 : i32
    %c0_i32_1 = arith.constant 0 : i32
    return %c0_i32, %c0_i32_0 : i32, i32
  }
  func.func @transform_8(%arg0: i32) -> (i32, i32) {
    %c0_i32 = arith.constant 0 : i32
    %c0_i32_0 = arith.constant 0 : i32
    %c0_i32_1 = arith.constant 0 : i32
    return %c0_i32, %c0_i32_0 : i32, i32
  }
  func.func @transform_9(%arg0: i32) -> (i32, i32) {
    %c0_i32 = arith.constant 0 : i32
    %c0_i32_0 = arith.constant 0 : i32
    return %arg0, %c0_i32 : i32, i32
  }
}

</mosaic_0001>

<llo_original>
// kernel: tpu_custom_call.1
$region0: #{tpu_custom_call.1}
  #allocation0 [shape = 'u32[]', space=smem, size = 0x4, offset = 0x4, fixed_abs, tag = 'smem constant byte address 0x4 - core index']
  #allocation1 [shape = 'u32[144,128]{1,0:T(1,128)}', space=vmem, size = 0x12000, scoped, tag = 'internal scratch']
  #allocation2 [shape = 'f32[1,1]{1,0:T(1,128)S(1)}', space=vmem, size = 0x200, scoped, tag = 'scoped memory for tpu_custom_call.1']
  %s0 = inlined_call_operand.hbm [shape: f32[16,32], index: 0, kind: input, shape index: {}]
  %s1 = inlined_call_operand.hbm [shape: f32[16,32], index: 1, kind: input, shape index: {}]
  %s2 = inlined_call_operand.hbm [shape: f32[32,32], index: 2, kind: input, shape index: {}]
  %s3 = inlined_call_operand.hbm [shape: f32[32,32], index: 3, kind: input, shape index: {}]
  %s4 = inlined_call_operand.vmem [shape: f32[1,32], index: 4, kind: input, shape index: {}]
  %s5 = inlined_call_operand.vmem [shape: f32[1,32], index: 5, kind: input, shape index: {}]
  %s6 = inlined_call_operand.vmem [shape: f32[1,32], index: 6, kind: input, shape index: {}]
  %s7 = inlined_call_operand.vmem [shape: f32[1,32], index: 7, kind: input, shape index: {}]
  %s8 = inlined_call_operand.<no memory space> [shape: f32[1,1], index: 8, kind: input, shape index: {}]
  %s9 = inlined_call_operand.vmem [shape: f32[16,2], index: 9, kind: output, shape index: {}]
  %s10 = sld [smem:[#allocation0]]
  $region62: #{tpu_custom_call.1} parent=0
    _
  %s12 = ssub.s32 1, %s10
  %s13 = scalar_select 0, %s12, %s10
  %v14 = vstv %s8
  %15 = vst [vmem:[#allocation2] sm:$0x1] %v14
  $region1: #{tpu_custom_call.1} parent=0
    #allocation3 [shape = 'u8[8192]{0}', space=vmem, size = 0x2000, scoped, tag = 'input window, operand 0, single buffered']
    #allocation4 [shape = 's32[1]{0}', space=sflag, size = 0x4, scoped, tag = 'scoped memory for tpu_custom_call.1']
    #allocation5 [shape = 'u8[8192]{0}', space=vmem, size = 0x2000, scoped, tag = 'input window, operand 1, single buffered']
    #allocation6 [shape = 's32[1]{0}', space=sflag, size = 0x4, scoped, tag = 'scoped memory for tpu_custom_call.1']
    #allocation7 [shape = 'u8[16384]{0}', space=vmem, size = 0x4000, scoped, tag = 'input window, operand 2, single buffered']
    #allocation8 [shape = 'u8[16384]{0}', space=vmem, size = 0x4000, scoped, tag = 'input window, operand 3, single buffered']
    #allocation9 [shape = 's32[1]{0}', space=sflag, size = 0x4, scoped, tag = 'scoped memory for tpu_custom_call.1']
    %16 = vsyncpa [#allocation4], 0
    %17 = vsyncpa [#allocation6], 0
    %18 = vsyncpa [#allocation9], 0
    // Predicated region
    $region2: #{tpu_custom_call.1} parent=1 // pred_check
      _
    $region3: #{tpu_custom_call.1} parent=1 // pred_check_branch
      %20 = sbr.rel (0) target = $region5
    $region4: #{tpu_custom_call.1} parent=1 // pred_region
      %s22 = ssub.s32 256, 256
      %23 = vsyncadd [#allocation4], %s22
      %s24 = sshll.u32 [#allocation3], 4
      %s25 = int_to_ptr.vmem [resolvable:$true] %s24
      %30 = dma.hbm_to_vmem [thread:$0]  %s0, 256, %s25, [#allocation4], 128, 128, 8
    $region5: #{tpu_custom_call.1} parent=1 // pred_fallthru
      _
    // Predicated region
    $region6: #{tpu_custom_call.1} parent=1 // pred_check
      _
    $region7: #{tpu_custom_call.1} parent=1 // pred_check_branch
      %32 = sbr.rel (0) target = $region9
    $region8: #{tpu_custom_call.1} parent=1 // pred_region
      %s34 = ssub.s32 256, 256
      %35 = vsyncadd [#allocation6], %s34
      %s36 = sshll.u32 [#allocation5], 4
      %s37 = int_to_ptr.vmem [resolvable:$true] %s36
      %42 = dma.hbm_to_vmem [thread:$0]  %s1, 256, %s37, [#allocation6], 128, 128, 8
    $region9: #{tpu_custom_call.1} parent=1 // pred_fallthru
      _
    // Predicated region
    $region10: #{tpu_custom_call.1} parent=1 // pred_check
      _
    $region11: #{tpu_custom_call.1} parent=1 // pred_check_branch
      %44 = sbr.rel (0) target = $region13
    $region12: #{tpu_custom_call.1} parent=1 // pred_region
      %s46 = ssub.s32 512, 512
      %47 = vsyncadd [#allocation6], %s46
      %s48 = sshll.u32 [#allocation7], 4
      %s49 = int_to_ptr.vmem [resolvable:$true] %s48
      %54 = dma.hbm_to_vmem [thread:$0]  %s2, 512, %s49, [#allocation6], 128, 128, 8
    $region13: #{tpu_custom_call.1} parent=1 // pred_fallthru
      _
    // Predicated region
    $region14: #{tpu_custom_call.1} parent=1 // pred_check
      _
    $region15: #{tpu_custom_call.1} parent=1 // pred_check_branch
      %56 = sbr.rel (0) target = $region17
    $region16: #{tpu_custom_call.1} parent=1 // pred_region
      %s58 = ssub.s32 512, 512
      %59 = vsyncadd [#allocation9], %s58
      %s60 = sshll.u32 [#allocation8], 4
      %s61 = int_to_ptr.vmem [resolvable:$true] %s60
      %66 = dma.hbm_to_vmem [thread:$0]  %s3, 512, %s61, [#allocation9], 128, 128, 8
    $region17: #{tpu_custom_call.1} parent=1 // pred_fallthru
      _
    // Predicated region
    $region18: #{tpu_custom_call.1} parent=1 // pred_check
      _
    $region19: #{tpu_custom_call.1} parent=1 // pred_check_branch
      %68 = sbr.rel (0) target = $region21
    $region20: #{tpu_custom_call.1} parent=1 // pred_region
      _
    $region21: #{tpu_custom_call.1} parent=1 // pred_fallthru
      _
    // Predicated region
    $region22: #{tpu_custom_call.1} parent=1 // pred_check
      _
    $region23: #{tpu_custom_call.1} parent=1 // pred_check_branch
      %70 = sbr.rel (0) target = $region25
    $region24: #{tpu_custom_call.1} parent=1 // pred_region
      _
    $region25: #{tpu_custom_call.1} parent=1 // pred_fallthru
      _
    // Predicated region
    $region26: #{tpu_custom_call.1} parent=1 // pred_check
      _
    $region27: #{tpu_custom_call.1} parent=1 // pred_check_branch
      %72 = sbr.rel (0) target = $region29
    $region28: #{tpu_custom_call.1} parent=1 // pred_region
      _
    $region29: #{tpu_custom_call.1} parent=1 // pred_fallthru
      _
    // Predicated region
    $region30: #{tpu_custom_call.1} parent=1 // pred_check
      _
    $region31: #{tpu_custom_call.1} parent=1 // pred_check_branch
      %74 = sbr.rel (0) target = $region33
    $region32: #{tpu_custom_call.1} parent=1 // pred_region
      _
    $region33: #{tpu_custom_call.1} parent=1 // pred_fallthru
      _
    // Predicated region
    $region34: #{tpu_custom_call.1} parent=1 // pred_check
      _
    $region35: #{tpu_custom_call.1} parent=1 // pred_check_branch
      %76 = sbr.rel (0) target = $region37
    $region36: #{tpu_custom_call.1} parent=1 // pred_region
      _
    $region37: #{tpu_custom_call.1} parent=1 // pred_fallthru
      _
    // Predicated region
    $region38: #{tpu_custom_call.1} parent=1 // pred_check
      _
    $region39: #{tpu_custom_call.1} parent=1 // pred_check_branch
      %78 = sbr.rel (0) target = $region41
    $region40: #{tpu_custom_call.1} parent=1 // pred_region
      %79 = dma.done [#allocation4], 256
    $region41: #{tpu_custom_call.1} parent=1 // pred_fallthru
      _
    // Predicated region
    $region42: #{tpu_custom_call.1} parent=1 // pred_check
      _
    $region43: #{tpu_custom_call.1} parent=1 // pred_check_branch
      %81 = sbr.rel (0) target = $region45
    $region44: #{tpu_custom_call.1} parent=1 // pred_region
      %82 = dma.done [#allocation6], 256
    $region45: #{tpu_custom_call.1} parent=1 // pred_fallthru
      _
    // Predicated region
    $region46: #{tpu_custom_call.1} parent=1 // pred_check
      _
    $region47: #{tpu_custom_call.1} parent=1 // pred_check_branch
      %84 = sbr.rel (0) target = $region49
    $region48: #{tpu_custom_call.1} parent=1 // pred_region
      %85 = dma.done [#allocation6], 512
    $region49: #{tpu_custom_call.1} parent=1 // pred_fallthru
      _
    // Predicated region
    $region50: #{tpu_custom_call.1} parent=1 // pred_check
      _
    $region51: #{tpu_custom_call.1} parent=1 // pred_check_branch
      %87 = sbr.rel (0) target = $region53
    $region52: #{tpu_custom_call.1} parent=1 // pred_region
      %88 = dma.done [#allocation9], 512
    $region53: #{tpu_custom_call.1} parent=1 // pred_fallthru
      _
    %v89 = vld [vmem:[#allocation3] sm:$0xff]
    %v90 = vld [vmem:[#allocation3 + $0x8] sm:$0xff]
    %v91 = vld [vmem:[#allocation7] sm:$0xff]
    %v92 = vld [vmem:[#allocation7 + $0x8] sm:$0xff]
    %v93 = vld [vmem:[#allocation7 + $0x10] sm:$0xff]
    %v94 = vld [vmem:[#allocation7 + $0x18] sm:$0xff]
    %v95 = vld [vmem:[#allocation5] sm:$0xff]
    %v96 = vld [vmem:[#allocation5 + $0x8] sm:$0xff]
    %v97 = vld [vmem:[#allocation8] sm:$0xff]
    %v98 = vld [vmem:[#allocation8 + $0x8] sm:$0xff]
    %v99 = vld [vmem:[#allocation8 + $0x10] sm:$0xff]
    %v100 = vld [vmem:[#allocation8 + $0x18] sm:$0xff]
    %vm101 = vcmask 261120
    %v103 = vsel %vm101, %v95, 0
    %v106 = vsel %vm101, %v96, 0
    %108 = vmatprep.subr.mxu0 0.0
    %109 = vmatpush1.msra.mxu0 %v97
    %110 = vmatprep.subr.mxu0 0.0
    %111 = vmatpush1.msra.mxu0 %v98
    %112 = vmatprep.subr.mxu0 0.0
    %113 = vmatpush1.msra.mxu0 %v99
    %114 = vmatprep.subr.mxu0 0.0
    %115 = vmatpush1.msra.mxu0 %v100
    %116 = vmatprep.subr.mxu0 0.0
    %117 = vmatpush1.msra.mxu0 0.0
    %118 = vmatprep.subr.mxu0 0.0
    %119 = vmatpush1.msra.mxu0 0.0
    %120 = vmatprep.subr.mxu0 0.0
    %121 = vmatpush1.msra.mxu0 0.0
    %122 = vmatprep.subr.mxu0 0.0
    %123 = vmatpush1.msra.mxu0 0.0
    %124 = vmatprep.subr.mxu0 0.0
    %125 = vmatpush1.msra.mxu0 0.0
    %126 = vmatprep.subr.mxu0 0.0
    %127 = vmatpush1.msra.mxu0 0.0
    %128 = vmatprep.subr.mxu0 0.0
    %129 = vmatpush1.msra.mxu0 0.0
    %130 = vmatprep.subr.mxu0 0.0
    %131 = vmatpush1.msra.mxu0 0.0
    %132 = vmatprep.subr.mxu0 0.0
    %133 = vmatpush1.msra.mxu0 0.0
    %134 = vmatprep.subr.mxu0 0.0
    %135 = vmatpush1.msra.mxu0 0.0
    %136 = vmatprep.subr.mxu0 0.0
    %137 = vmatpush1.msra.mxu0 0.0
    %138 = vmatprep.subr.mxu0 0.0
    %139 = vmatpush1.msra.mxu0 0.0
    %140 = vmatprep.subr.mxu0 0.0
    %141 = vmatpush1.msra.mxu0 0.0
    %142 = vmatprep.subr.mxu0 0.0
    %143 = vmatpush1.msra.mxu0 0.0
    %144 = vmatprep.subr.mxu0 0.0
    %145 = vmatpush1.msra.mxu0 0.0
    %146 = vmatprep.subr.mxu0 0.0
    %147 = vmatpush1.msra.mxu0 0.0
    %148 = vmatprep.subr.mxu0 0.0
    %149 = vmatpush1.msra.mxu0 0.0
    %150 = vmatprep.subr.mxu0 0.0
    %151 = vmatpush1.msra.mxu0 0.0
    %152 = vmatprep.subr.mxu0 0.0
    %153 = vmatpush1.msra.mxu0 0.0
    %154 = vmatprep.subr.mxu0 0.0
    %155 = vmatpush1.msra.mxu0 0.0
    %156 = vmatprep.subr.mxu0 0.0
    %157 = vmatpush1.msra.mxu0 0.0
    %158 = vmatprep.subr.mxu0 0.0
    %159 = vmatpush1.msra.mxu0 0.0
    %160 = vmatprep.subr.mxu0 0.0
    %161 = vmatpush1.msra.mxu0 0.0
    %162 = vmatprep.subr.mxu0 0.0
    %163 = vmatpush1.msra.mxu0 0.0
    %164 = vmatprep.subr.mxu0 0.0
    %165 = vmatpush1.msra.mxu0 0.0
    %166 = vmatprep.subr.mxu0 0.0
    %167 = vmatpush1.msra.mxu0 0.0
    %168 = vmatprep.subr.mxu0 0.0
    %169 = vmatpush1.msra.mxu0 0.0
    %170 = vmatprep.subr.mxu0 0.0
    %171 = vmatpush1.msra.mxu0 0.0
    %172 = vmatprep.mubr.f32.mxu0 0.0
    %173 = vmatmul.mubr.f32.gmra.mrb[0].mxu0 %v103
    %v174 = vpop.f32.mrb[0].mxu0
    %v175 = vadd.f32 0.0, %v174
    %v176 = vpop.f32.mrb[0].mxu0
    %177 = vmatprep.mubr.f32.mxu0 0.0
    %178 = vmatmul.mubr.f32.gmra.mrb[0].mxu0 %v106
    %v179 = vpop.f32.mrb[0].mxu0
    %v180 = vadd.f32 0.0, %v179
    %v181 = vpop.f32.mrb[0].mxu0
    %182 = vdwg.mxu0
    %v184 = vsel %vm101, %v89, 0
    %v187 = vsel %vm101, %v90, 0
    %189 = vmatprep.subr.mxu0 0.0
    %190 = vmatpush1.msra.mxu0 %v91
    %191 = vmatprep.subr.mxu0 0.0
    %192 = vmatpush1.msra.mxu0 %v92
    %193 = vmatprep.subr.mxu0 0.0
    %194 = vmatpush1.msra.mxu0 %v93
    %195 = vmatprep.subr.mxu0 0.0
    %196 = vmatpush1.msra.mxu0 %v94
    %197 = vmatprep.subr.mxu0 0.0
    %198 = vmatpush1.msra.mxu0 0.0
    %199 = vmatprep.subr.mxu0 0.0
    %200 = vmatpush1.msra.mxu0 0.0
    %201 = vmatprep.subr.mxu0 0.0
    %202 = vmatpush1.msra.mxu0 0.0
    %203 = vmatprep.subr.mxu0 0.0
    %204 = vmatpush1.msra.mxu0 0.0
    %205 = vmatprep.subr.mxu0 0.0
    %206 = vmatpush1.msra.mxu0 0.0
    %207 = vmatprep.subr.mxu0 0.0
    %208 = vmatpush1.msra.mxu0 0.0
    %209 = vmatprep.subr.mxu0 0.0
    %210 = vmatpush1.msra.mxu0 0.0
    %211 = vmatprep.subr.mxu0 0.0
    %212 = vmatpush1.msra.mxu0 0.0
    %213 = vmatprep.subr.mxu0 0.0
    %214 = vmatpush1.msra.mxu0 0.0
    %215 = vmatprep.subr.mxu0 0.0
    %216 = vmatpush1.msra.mxu0 0.0
    %217 = vmatprep.subr.mxu0 0.0
    %218 = vmatpush1.msra.mxu0 0.0
    %219 = vmatprep.subr.mxu0 0.0
    %220 = vmatpush1.msra.mxu0 0.0
    %221 = vmatprep.subr.mxu0 0.0
    %222 = vmatpush1.msra.mxu0 0.0
    %223 = vmatprep.subr.mxu0 0.0
    %224 = vmatpush1.msra.mxu0 0.0
    %225 = vmatprep.subr.mxu0 0.0
    %226 = vmatpush1.msra.mxu0 0.0
    %227 = vmatprep.subr.mxu0 0.0
    %228 = vmatpush1.msra.mxu0 0.0
    %229 = vmatprep.subr.mxu0 0.0
    %230 = vmatpush1.msra.mxu0 0.0
    %231 = vmatprep.subr.mxu0 0.0
    %232 = vmatpush1.msra.mxu0 0.0
    %233 = vmatprep.subr.mxu0 0.0
    %234 = vmatpush1.msra.mxu0 0.0
    %235 = vmatprep.subr.mxu0 0.0
    %236 = vmatpush1.msra.mxu0 0.0
    %237 = vmatprep.subr.mxu0 0.0
    %238 = vmatpush1.msra.mxu0 0.0
    %239 = vmatprep.subr.mxu0 0.0
    %240 = vmatpush1.msra.mxu0 0.0
    %241 = vmatprep.subr.mxu0 0.0
    %242 = vmatpush1.msra.mxu0 0.0
    %243 = vmatprep.subr.mxu0 0.0
    %244 = vmatpush1.msra.mxu0 0.0
    %245 = vmatprep.subr.mxu0 0.0
    %246 = vmatpush1.msra.mxu0 0.0
    %247 = vmatprep.subr.mxu0 0.0
    %248 = vmatpush1.msra.mxu0 0.0
    %249 = vmatprep.subr.mxu0 0.0
    %250 = vmatpush1.msra.mxu0 0.0
    %251 = vmatprep.subr.mxu0 0.0
    %252 = vmatpush1.msra.mxu0 0.0
    %253 = vmatprep.mubr.f32.mxu0 0.0
    %254 = vmatmul.mubr.f32.gmra.mrb[0].mxu0 %v184
    %v255 = vpop.f32.mrb[0].mxu0
    %v256 = vadd.f32 %v175, %v255
    %v257 = vpop.f32.mrb[0].mxu0
    %258 = vmatprep.mubr.f32.mxu0 0.0
    %259 = vmatmul.mubr.f32.gmra.mrb[0].mxu0 %v187
    %v260 = vpop.f32.mrb[0].mxu0
    %v261 = vadd.f32 %v180, %v260
    %v262 = vpop.f32.mrb[0].mxu0
    %263 = vdwg.mxu0
    %v264 = vld [vmem:[%s4] sm:$0x1]
    %v266 = vlaneseq
    %v267 = vshrl.u32 %v266, 7
    %v268 = vsub.s32 0, %v267
    %v269 = vrot.slane %v264, %v268
    %v271 = vadd.f32 %v256, %v269
    %v272 = vadd.f32 %v261, %v269
    %v273 = vsel %vm101, %v271, 0.0
    %274 = vadd.xlane.f32.xlu0 %v273
    %v275 = vpop.xlane.xlu0 %274
    %v276 = vsel %vm101, %v272, 0.0
    %277 = vadd.xlane.f32.xlu0 %v276
    %v278 = vpop.xlane.xlu0 %277
    %v279 = vrcp.pop 32.0
    %v280 = vmul.f32 %v275, %v279
    %v281 = vmul.f32 %v278, %v279
    %v282 = vsub.f32 %v271, %v280
    %v283 = vsub.f32 %v272, %v281
    %v284 = vmul.f32 %v282, %v282
    %v285 = vmul.f32 %v283, %v283
    %v286 = vsel %vm101, %v284, 0.0
    %287 = vadd.xlane.f32.xlu0 %v286
    %v288 = vpop.xlane.xlu0 %287
    %v289 = vsel %vm101, %v285, 0.0
    %290 = vadd.xlane.f32.xlu0 %v289
    %v291 = vpop.xlane.xlu0 %290
    %v292 = vmul.f32 %v288, %v279
    %v293 = vmul.f32 %v291, %v279
    %v294 = vadd.f32 %v292, 1e-05
    %v295 = vadd.f32 %v293, 1e-05
    %v296 = vrsqrt.pop %v294
    %v297 = vrsqrt.pop %v295
    %v298 = vmul.f32 %v282, %v296
    %v299 = vmul.f32 %v283, %v297
    %v300 = vld [vmem:[%s5] sm:$0x1]
    %v302 = vlaneseq
    %v303 = vshrl.u32 %v302, 7
    %v304 = vsub.s32 0, %v303
    %v305 = vrot.slane %v300, %v304
    %v307 = vmul.f32 %v298, %v305
    %v308 = vmul.f32 %v299, %v305
    %v309 = vld [vmem:[%s6] sm:$0x1]
    %v311 = vlaneseq
    %v312 = vshrl.u32 %v311, 7
    %v313 = vsub.s32 0, %v312
    %v314 = vrot.slane %v309, %v313
    %v316 = vadd.f32 %v307, %v314
    %v317 = vadd.f32 %v308, %v314
    %v318 = vmax.f32 %v316, 0.0
    %v319 = vmax.f32 %v317, 0.0
    %vm320 = vcmp.ne.f32.partialorder %v316, %v316
    %vm321 = vcmp.ne.f32.partialorder %v317, %v317
    %v322 = vadd.f32 %v316, 0.0
    %v323 = vadd.f32 %v317, 0.0
    %v324 = vand.u32 2147483647, %v316
    %v325 = vand.u32 2147483647, %v317
    %v326 = vsub.f32 0.0, %v324
    %v327 = vsub.f32 0.0, %v325
    %v328 = vmul.f32 %v326, 1.442695
    %v329 = vpow.pop %v328
    %v330 = vmul.f32 %v327, 1.442695
    %v331 = vpow.pop %v330
    %v332 = vadd.f32 %v329, 1.0
    %v333 = vlog2.pop %v332
    %v334 = vmul.f32 %v333, 0.6931472
    %v335 = vmul.f32 -0.5, %v329
    %v336 = vadd.f32 %v335, 1.0
    %v337 = vmul.f32 %v336, %v329
    %v338 = vand.u32 2147483647, %v329
    %vm339 = vcmp.lt.f32.partialorder %v338, 0.0004427343
    %v340 = vsel %vm339, %v337, %v334
    %v341 = vadd.f32 %v331, 1.0
    %v342 = vlog2.pop %v341
    %v343 = vmul.f32 %v342, 0.6931472
    %v344 = vmul.f32 -0.5, %v331
    %v345 = vadd.f32 %v344, 1.0
    %v346 = vmul.f32 %v345, %v331
    %v347 = vand.u32 2147483647, %v331
    %vm348 = vcmp.lt.f32.partialorder %v347, 0.0004427343
    %v349 = vsel %vm348, %v346, %v343
    %v350 = vadd.f32 %v318, %v340
    %v351 = vadd.f32 %v319, %v349
    %v352 = vsel %vm320, %v322, %v350
    %v353 = vsel %vm321, %v323, %v351
    %v354 = vld [vmem:[%s7] sm:$0x1]
    %v356 = vlaneseq
    %v357 = vshrl.u32 %v356, 7
    %v358 = vsub.s32 0, %v357
    %v359 = vrot.slane %v354, %v358
    %v361 = vmul.f32 %v352, %v359
    %v362 = vmul.f32 %v353, %v359
    %v363 = vsel %vm101, %v361, 0.0
    %364 = vadd.xlane.f32.xlu0 %v363
    %v365 = vpop.xlane.xlu0 %364
    %v366 = vsel %vm101, %v362, 0.0
    %367 = vadd.xlane.f32.xlu0 %v366
    %v368 = vpop.xlane.xlu0 %367
    %v369 = vld [vmem:[#allocation2] sm:$0x1]
    %v371 = vlaneseq
    %v372 = vshrl.u32 %v371, 7
    %v373 = vsub.s32 0, %v372
    %v374 = vrot.slane %v369, %v373
    %v376 = vadd.f32 %v365, %v374
    %v377 = vadd.f32 %v368, %v374
    %v378 = vsub.f32 0.0, %v376
    %v379 = vsub.f32 0.0, %v377
    %v380 = vmul.f32 %v378, 1.442695
    %v381 = vpow.pop %v380
    %v382 = vmul.f32 %v379, 1.442695
    %v383 = vpow.pop %v382
    %v384 = vadd.f32 %v381, 1.0
    %v385 = vadd.f32 %v383, 1.0
    %v386 = vrcp.pop %v384
    %v387 = vmul.f32 1.0, %v386
    %v388 = vrcp.pop %v385
    %v389 = vmul.f32 1.0, %v388
    %v390 = vsub.f32 1.0, %v387
    %v391 = vsub.f32 1.0, %v389
    %vm392 = vcmask 7168
    %393 = vst.msk [vmem:[%s9] sm:$0xff] %vm392, %v390
    %394 = vst.msk [vmem:[%s9 + $0x8] sm:$0xff] %vm392, %v391
    %397 = vrot.lane.b32.xlu0 %v387, 1
    %v398 = vpop.permute.xlu0 %397
    %399 = vrot.lane.b32.xlu0 %v389, 1
    %v400 = vpop.permute.xlu0 %399
    %vm403 = vcmask 15368
    %404 = vst.msk [vmem:[%s9] sm:$0xff] %vm403, %v398
    %405 = vst.msk [vmem:[%s9 + $0x8] sm:$0xff] %vm403, %v400
    // Predicated region
    $region54: #{tpu_custom_call.1} parent=1 // pred_check
      _
    $region55: #{tpu_custom_call.1} parent=1 // pred_check_branch
      %407 = sbr.rel (0) target = $region57
    $region56: #{tpu_custom_call.1} parent=1 // pred_region
      _
    $region57: #{tpu_custom_call.1} parent=1 // pred_fallthru
      _
    // Predicated region
    $region58: #{tpu_custom_call.1} parent=1 // pred_check
      _
    $region59: #{tpu_custom_call.1} parent=1 // pred_check_branch
      %409 = sbr.rel (0) target = $region61
    $region60: #{tpu_custom_call.1} parent=1 // pred_region
      _
    $region61: #{tpu_custom_call.1} parent=1 // pred_fallthru
      _
    %410 = vsyncpa [#allocation4], 1
    %411 = vsyncpa [#allocation6], 1
    %412 = vsyncpa [#allocation9], 1

</llo_original>
